<compile_context>
chip_gen: v6e
topology: v6e:2x2x1
jax: 0.10.0
libtpu: 0.0.40
codegen_flags: <defaults>
</compile_context>

<pallas_src>
import functools

import jax
import jax.numpy as jnp
from jax import lax
from jax.experimental import pallas as pl
from jax.experimental.pallas import tpu as pltpu


def _rnn_chunk_kernel(h0_ref, wr_ref, br_ref, inter_ref, h_ref, *, steps):
    """One (batch_tile, time_chunk) grid step: `steps` recurrence iterations.

    h_ref is a VMEM scratch carrying the hidden state across the sequential
    time-chunk axis; inside a chunk the state is carried in vregs.
    """
    tc = pl.program_id(1)

    @pl.when(tc == 0)
    def _():
        h_ref[...] = h0_ref[...]

    wr = wr_ref[...]          # hoisted loads of the resident weight / bias
    br = br_ref[...]

    def step(i, h):
        # h_t = tanh(Wr @ h_{t-1} + br); MXU in wr.dtype, f32 accumulate.
        h = jnp.tanh(
            jnp.dot(wr, h.astype(wr.dtype), preferred_element_type=jnp.float32)
            + br)
        inter_ref[i] = h.astype(inter_ref.dtype)   # lane-dense unmasked store
        return h

    # TODO(synk): for large H, keeping Wr pushed into the MXU across steps via
    # pltpu.matmul_push_rhs/acc_lhs/pop would remove the per-step weight push.
    h_ref[...] = lax.fori_loop(0, steps, step, h_ref[...], unroll=True)


def rnn_simple_forward(x, wi, bi, wr, br, wo, bo, *, T,
                       mxu_dtype=jnp.bfloat16, batch_tile=128,
                       time_chunk=8, inter_dtype=jnp.float32):
    """Forward pass of RNNSimple.  Returns (out, stacked [h_0 .. h_T]).

    batch_tile: lane tile (multiple of 128).  For large B prefer 256-512
      (fewer, fatter MXU pushes) subject to the VMEM budget; on v7x make sure
      there are >= 2 batch tiles so both TensorCores get work.
    time_chunk: recurrence steps per grid step (amortizes per-step pipeline
      overhead).  Keep 2*time_chunk*H*batch_tile*itemsize well under VMEM.
    inter_dtype: dtype of the streamed hidden-state stack (bf16 halves the
      dominant HBM writeback -- useful on v5e/v6e).
    """
    f32 = jnp.float32
    D, B = x.shape
    H = wi.shape[0]
    O = wo.shape[0]

    x = x.astype(f32)
    wi = wi.astype(f32)
    bi = bi.astype(f32).reshape(H, -1)
    wo = wo.astype(f32)
    bo = bo.astype(f32).reshape(O, -1)
    br2 = br.astype(f32).reshape(H, -1)

    # Non-recurrent input projection in plain XLA (f32).
    h0 = jnp.tanh(wi @ x + bi)                               # (H, B)

    if T == 0:
        return jnp.tanh(wo @ h0 + bo), h0[None].astype(inter_dtype)

    # ---- recurrence t = 1..T as a Pallas kernel ---------------------------
    bt = batch_tile
    B_pad = pl.cdiv(B, bt) * bt
    h0_p = h0 if B_pad == B else jnp.pad(h0, ((0, 0), (0, B_pad - B)))
    n_bt = B_pad // bt    # NOTE(v7x): n_bt >= 2 needed to feed both TCs; with
                          # a single 128-lane tile one TensorCore idles.

    tc_len = max(1, min(time_chunk, T))
    n_tc = pl.cdiv(T, tc_len)
    T_pad = n_tc * tc_len  # trailing padded steps are computed & sliced off

    wr_m = wr.astype(mxu_dtype)
    br_b = jnp.broadcast_to(br2, (H, bt))    # lane-dense bias tile

    w_bytes = jnp.dtype(mxu_dtype).itemsize
    i_bytes = jnp.dtype(inter_dtype).itemsize
    cost = pl.CostEstimate(
        flops=2 * T_pad * H * H * B_pad,
        transcendentals=T_pad * H * B_pad,
        bytes_accessed=(w_bytes * H * H + 4 * H * bt + 4 * H * B_pad
                        + i_bytes * T_pad * H * B_pad),
    )
    # Wr + br single-buffered, double-buffered h0, f32 carry, double-buffered
    # (tc_len, H, bt) inter block; 4x headroom, clamped to [16, 48] MiB (v7x).
    per_core = (w_bytes * H * H + 4 * H * bt + 3 * 4 * H * bt
                + 2 * i_bytes * tc_len * H * bt)
    vmem_limit = int(min(48 * 2 ** 20, max(16 * 2 ** 20, 4 * per_core)))

    kernel = functools.partial(_rnn_chunk_kernel, steps=tc_len)
    out_shape = jax.ShapeDtypeStruct((T_pad, H, B_pad), inter_dtype)

    def build(single_buffer_consts):
        const_kw = ({"pipeline_mode": pl.Buffered(1)}
                    if single_buffer_consts else {})
        return pl.pallas_call(
            kernel,
            out_shape=out_shape,
            grid_spec=pltpu.PrefetchScalarGridSpec(
                num_scalar_prefetch=0,
                grid=(n_bt, n_tc),
                in_specs=[
                    pl.BlockSpec((H, bt), lambda b, t: (0, b)),         # h0
                    pl.BlockSpec((H, H), lambda b, t: (0, 0),
                                 **const_kw),                           # Wr
                    pl.BlockSpec((H, bt), lambda b, t: (0, 0),
                                 **const_kw),                           # br
                ],
                out_specs=pl.BlockSpec((tc_len, H, bt),
                                       lambda b, t: (t, 0, b)),         # h_t
                scratch_shapes=[pltpu.VMEM((H, bt), jnp.float32)],      # carry
            ),
            compiler_params=pltpu.CompilerParams(
                dimension_semantics=("parallel", "arbitrary"),
                vmem_limit_bytes=vmem_limit,
            ),
            cost_estimate=cost,
        )

    try:
        inter_rec = build(True)(h0_p, wr_m, br_b)
    except Exception:  # single-buffer pipeline hint unsupported -> default 2
        inter_rec = build(False)(h0_p, wr_m, br_b)

    inter_rec = inter_rec[:T, :, :B]            # drop time / batch padding
    h_T = inter_rec[T - 1].astype(f32)
    out = jnp.tanh(wo @ h_T + bo)               # output projection in XLA
    inter = jnp.concatenate([h0[None].astype(inter_dtype), inter_rec], axis=0)
    return out, inter


def _reference(x, wi, bi, wr, br, wo, bo, T):
    act = jnp.tanh
    h = act(wi @ x + bi)
    inter = [h]
    for _ in range(T):
        inter.append(act(wr @ inter[-1] + br))
    return act(wo @ inter[-1] + bo), jnp.stack(inter)


if __name__ == "__main__":
    # Small, deterministic configuration.
    D, H, O, B, T = 16, 32, 8, 8, 4

    key = jax.random.PRNGKey(0)
    ks = jax.random.split(key, 7)
    x  = jax.random.normal(ks[0], (D, B), dtype=jnp.float32)
    wi = jax.random.normal(ks[1], (H, D), dtype=jnp.float32) * 0.3
    bi = jax.random.normal(ks[2], (H, 1), dtype=jnp.float32) * 0.1
    wr = jax.random.normal(ks[3], (H, H), dtype=jnp.float32) * 0.3
    br = jax.random.normal(ks[4], (H, 1), dtype=jnp.float32) * 0.1
    wo = jax.random.normal(ks[5], (O, H), dtype=jnp.float32) * 0.3
    bo = jax.random.normal(ks[6], (O, 1), dtype=jnp.float32) * 0.1

    ref_out, ref_inter = _reference(x, wi, bi, wr, br, wo, bo, T)

    # 1) f32 MXU, single time chunk (T <= time_chunk): tight tolerance.
    out_a, inter_a = rnn_simple_forward(x, wi, bi, wr, br, wo, bo, T=T,
                                        mxu_dtype=jnp.float32, time_chunk=8)
    jax.block_until_ready(out_a)
    jax.block_until_ready(inter_a)
    assert out_a.shape == (O, B) and inter_a.shape == (T + 1, H, B)
    assert jnp.allclose(out_a, ref_out, atol=1e-5), "f32 output mismatch"
    assert jnp.allclose(inter_a, ref_inter, atol=1e-5), "f32 inter mismatch"

    # 2) f32 MXU, multiple time chunks (exercises the hidden-state carry
    #    across sequential grid steps): tight tolerance.
    out_b, inter_b = rnn_simple_forward(x, wi, bi, wr, br, wo, bo, T=T,
                                        mxu_dtype=jnp.float32, time_chunk=2)
    jax.block_until_ready(out_b)
    assert jnp.allclose(out_b, ref_out, atol=1e-5), "chunked output mismatch"
    assert jnp.allclose(inter_b, ref_inter, atol=1e-5), "chunked inter mismatch"

    # 3) f32 MXU, T not a multiple of the time chunk (exercises time padding).
    T2 = 5
    ref_out2, ref_inter2 = _reference(x, wi, bi, wr, br, wo, bo, T2)
    out_c, inter_c = rnn_simple_forward(x, wi, bi, wr, br, wo, bo, T=T2,
                                        mxu_dtype=jnp.float32, time_chunk=2)
    jax.block_until_ready(out_c)
    assert inter_c.shape == (T2 + 1, H, B)
    assert jnp.allclose(out_c, ref_out2, atol=1e-5), "padded-T output mismatch"
    assert jnp.allclose(inter_c, ref_inter2, atol=1e-5), "padded-T inter mismatch"

    # 4) bf16 MXU operands / f32 accumulate (v6e/v7x native): loose tolerance.
    out_d, inter_d = rnn_simple_forward(x, wi, bi, wr, br, wo, bo, T=T,
                                        mxu_dtype=jnp.bfloat16)
    jax.block_until_ready(out_d)
    assert jnp.allclose(out_d, ref_out, atol=5e-2), "bf16 output mismatch"
    assert jnp.allclose(inter_d, ref_inter, atol=5e-2), "bf16 inter mismatch"

    print("KERNEL_OK")
</pallas_src>

<mosaic_0001>
module attributes {stable_mosaic.version = 11 : i64} {
  func.func @_rnn_chunk_kernel(%arg0: i32, %arg1: i32, %arg2: memref<32x128xf32, #tpu.memory_space<vmem>>, %arg3: memref<32x32xf32, #tpu.memory_space<vmem>>, %arg4: memref<32x128xf32, #tpu.memory_space<vmem>>, %arg5: memref<4x32x128xf32, #tpu.memory_space<vmem>>, %arg6: memref<32x128xf32, #tpu.memory_space<vmem>>) attributes {dimension_semantics = [#tpu.dimension_semantics<parallel>, #tpu.dimension_semantics<arbitrary>], iteration_bounds = array<i64: 1, 1>, scalar_prefetch = 0 : i64, scratch_operands = 1 : i64, tpu.core_type = #tpu.core_type<tc>, window_params = [{transform_indices = @transform_0, window_bounds = array<i64: 32, 128>}, {pipeline_mode = #tpu.pipeline_mode<synchronous>, transform_indices = @transform_1, window_bounds = array<i64: 32, 32>}, {pipeline_mode = #tpu.pipeline_mode<synchronous>, transform_indices = @transform_2, window_bounds = array<i64: 32, 128>}, {transform_indices = @transform_3, window_bounds = array<i64: 4, 32, 128>}]} {
    %c0_i32 = arith.constant 0 : i32
    %0 = arith.cmpi eq, %arg1, %c0_i32 : i32
    %1 = arith.extui %0 : i1 to i32
    %c0_i32_0 = arith.constant 0 : i32
    %2 = arith.cmpi ne, %1, %c0_i32_0 : i32
    scf.if %2 {
      %c0_20 = arith.constant 0 : index
      %c0_21 = arith.constant 0 : index
      %35 = vector.load %arg2[%c0_20, %c0_21] : memref<32x128xf32, #tpu.memory_space<vmem>>, vector<32x128xf32>
      %c0_22 = arith.constant 0 : index
      %c0_23 = arith.constant 0 : index
      %36 = vector.load %arg6[%c0_22, %c0_23] : memref<32x128xf32, #tpu.memory_space<vmem>>, vector<32x128xf32>
      tpu.vector_store %arg6[%c0_22, %c0_23], %35 {strides = array<i32>} : memref<32x128xf32, #tpu.memory_space<vmem>>, vector<32x128xf32>,
    } else {
    }
    %c0 = arith.constant 0 : index
    %c0_1 = arith.constant 0 : index
    %3 = vector.load %arg3[%c0, %c0_1] : memref<32x32xf32, #tpu.memory_space<vmem>>, vector<32x32xf32>
    %c0_2 = arith.constant 0 : index
    %c0_3 = arith.constant 0 : index
    %4 = vector.load %arg4[%c0_2, %c0_3] : memref<32x128xf32, #tpu.memory_space<vmem>>, vector<32x128xf32>
    %c0_4 = arith.constant 0 : index
    %c0_5 = arith.constant 0 : index
    %5 = vector.load %arg6[%c0_4, %c0_5] : memref<32x128xf32, #tpu.memory_space<vmem>>, vector<32x128xf32>
    %c0_i32_6 = arith.constant 0 : i32
    %cst = arith.constant dense<0.000000e+00> : vector<32x128xf32>
    %6 = tpu.matmul %3, %5, %cst {dimension_numbers = #tpu.dot_dimension_numbers<[1], [0], [0], [1], [0, 0, 1, 1], [], []>} : vector<32x32xf32>, vector<32x128xf32>, vector<32x128xf32> -> vector<32x128xf32>
    %7 = arith.addf %6, %4 : vector<32x128xf32>
    %8 = math.tanh %7 : vector<32x128xf32>
    %9 = arith.index_cast %c0_i32_6 : i32 to index
    %c0_7 = arith.constant 0 : index
    %c0_8 = arith.constant 0 : index
    %10 = vector.load %arg5[%9, %c0_7, %c0_8] : memref<4x32x128xf32, #tpu.memory_space<vmem>>, vector<1x32x128xf32>
    %11 = vector.shape_cast %10 : vector<1x32x128xf32> to vector<32x128xf32>
    %12 = vector.shape_cast %8 : vector<32x128xf32> to vector<1x32x128xf32>
    tpu.vector_store %arg5[%9, %c0_7, %c0_8], %12 {strides = array<i32>} : memref<4x32x128xf32, #tpu.memory_space<vmem>>, vector<1x32x128xf32>,
    %c1_i32 = arith.constant 1 : i32
    %cst_9 = arith.constant dense<0.000000e+00> : vector<32x128xf32>
    %13 = tpu.matmul %3, %8, %cst_9 {dimension_numbers = #tpu.dot_dimension_numbers<[1], [0], [0], [1], [0, 0, 1, 1], [], []>} : vector<32x32xf32>, vector<32x128xf32>, vector<32x128xf32> -> vector<32x128xf32>
    %14 = arith.addf %13, %4 : vector<32x128xf32>
    %15 = math.tanh %14 : vector<32x128xf32>
    %16 = arith.index_cast %c1_i32 : i32 to index
    %c0_10 = arith.constant 0 : index
    %c0_11 = arith.constant 0 : index
    %17 = vector.load %arg5[%16, %c0_10, %c0_11] : memref<4x32x128xf32, #tpu.memory_space<vmem>>, vector<1x32x128xf32>
    %18 = vector.shape_cast %17 : vector<1x32x128xf32> to vector<32x128xf32>
    %19 = vector.shape_cast %15 : vector<32x128xf32> to vector<1x32x128xf32>
    tpu.vector_store %arg5[%16, %c0_10, %c0_11], %19 {strides = array<i32>} : memref<4x32x128xf32, #tpu.memory_space<vmem>>, vector<1x32x128xf32>,
    %c2_i32 = arith.constant 2 : i32
    %cst_12 = arith.constant dense<0.000000e+00> : vector<32x128xf32>
    %20 = tpu.matmul %3, %15, %cst_12 {dimension_numbers = #tpu.dot_dimension_numbers<[1], [0], [0], [1], [0, 0, 1, 1], [], []>} : vector<32x32xf32>, vector<32x128xf32>, vector<32x128xf32> -> vector<32x128xf32>
    %21 = arith.addf %20, %4 : vector<32x128xf32>
    %22 = math.tanh %21 : vector<32x128xf32>
    %23 = arith.index_cast %c2_i32 : i32 to index
    %c0_13 = arith.constant 0 : index
    %c0_14 = arith.constant 0 : index
    %24 = vector.load %arg5[%23, %c0_13, %c0_14] : memref<4x32x128xf32, #tpu.memory_space<vmem>>, vector<1x32x128xf32>
    %25 = vector.shape_cast %24 : vector<1x32x128xf32> to vector<32x128xf32>
    %26 = vector.shape_cast %22 : vector<32x128xf32> to vector<1x32x128xf32>
    tpu.vector_store %arg5[%23, %c0_13, %c0_14], %26 {strides = array<i32>} : memref<4x32x128xf32, #tpu.memory_space<vmem>>, vector<1x32x128xf32>,
    %c3_i32 = arith.constant 3 : i32
    %cst_15 = arith.constant dense<0.000000e+00> : vector<32x128xf32>
    %27 = tpu.matmul %3, %22, %cst_15 {dimension_numbers = #tpu.dot_dimension_numbers<[1], [0], [0], [1], [0, 0, 1, 1], [], []>} : vector<32x32xf32>, vector<32x128xf32>, vector<32x128xf32> -> vector<32x128xf32>
    %28 = arith.addf %27, %4 : vector<32x128xf32>
    %29 = math.tanh %28 : vector<32x128xf32>
    %30 = arith.index_cast %c3_i32 : i32 to index
    %c0_16 = arith.constant 0 : index
    %c0_17 = arith.constant 0 : index
    %31 = vector.load %arg5[%30, %c0_16, %c0_17] : memref<4x32x128xf32, #tpu.memory_space<vmem>>, vector<1x32x128xf32>
    %32 = vector.shape_cast %31 : vector<1x32x128xf32> to vector<32x128xf32>
    %33 = vector.shape_cast %29 : vector<32x128xf32> to vector<1x32x128xf32>
    tpu.vector_store %arg5[%30, %c0_16, %c0_17], %33 {strides = array<i32>} : memref<4x32x128xf32, #tpu.memory_space<vmem>>, vector<1x32x128xf32>,
    %c4_i32 = arith.constant 4 : i32
    %c0_18 = arith.constant 0 : index
    %c0_19 = arith.constant 0 : index
    %34 = vector.load %arg6[%c0_18, %c0_19] : memref<32x128xf32, #tpu.memory_space<vmem>>, vector<32x128xf32>
    tpu.vector_store %arg6[%c0_18, %c0_19], %29 {strides = array<i32>} : memref<32x128xf32, #tpu.memory_space<vmem>>, vector<32x128xf32>,
    return
  }
  func.func @transform_0(%arg0: i32, %arg1: i32) -> (i32, i32) {
    %c0_i32 = arith.constant 0 : i32
    %c0_i32_0 = arith.constant 0 : i32
    return %c0_i32, %arg0 : i32, i32
  }
  func.func @transform_1(%arg0: i32, %arg1: i32) -> (i32, i32) {
    %c0_i32 = arith.constant 0 : i32
    %c0_i32_0 = arith.constant 0 : i32
    %c0_i32_1 = arith.constant 0 : i32
    return %c0_i32, %c0_i32_0 : i32, i32
  }
  func.func @transform_2(%arg0: i32, %arg1: i32) -> (i32, i32) {
    %c0_i32 = arith.constant 0 : i32
    %c0_i32_0 = arith.constant 0 : i32
    %c0_i32_1 = arith.constant 0 : i32
    return %c0_i32, %c0_i32_0 : i32, i32
  }
  func.func @transform_3(%arg0: i32, %arg1: i32) -> (i32, i32, i32) {
    %c0_i32 = arith.constant 0 : i32
    %c0_i32_0 = arith.constant 0 : i32
    return %arg1, %c0_i32, %arg0 : i32, i32, i32
  }
}

module attributes {stable_mosaic.version = 11 : i64} {
  func.func @_rnn_chunk_kernel(%arg0: i32, %arg1: i32, %arg2: memref<32x128xf32, #tpu.memory_space<vmem>>, %arg3: memref<32x32xf32, #tpu.memory_space<vmem>>, %arg4: memref<32x128xf32, #tpu.memory_space<vmem>>, %arg5: memref<4x32x128xf32, #tpu.memory_space<vmem>>, %arg6: memref<32x128xf32, #tpu.memory_space<vmem>>) attributes {dimension_semantics = [#tpu.dimension_semantics<parallel>, #tpu.dimension_semantics<arbitrary>], iteration_bounds = array<i64: 1, 1>, scalar_prefetch = 0 : i64, scratch_operands = 1 : i64, tpu.core_type = #tpu.core_type<tc>, window_params = [{transform_indices = @transform_0, window_bounds = array<i64: 32, 128>}, {pipeline_mode = #tpu.pipeline_mode<synchronous>, transform_indices = @transform_1, window_bounds = array<i64: 32, 32>}, {pipeline_mode = #tpu.pipeline_mode<synchronous>, transform_indices = @transform_2, window_bounds = array<i64: 32, 128>}, {transform_indices = @transform_3, window_bounds = array<i64: 4, 32, 128>}]} {
    %c0_i32 = arith.constant 0 : i32
    %0 = arith.cmpi eq, %arg1, %c0_i32 : i32
    %1 = arith.extui %0 : i1 to i32
    %c0_i32_0 = arith.constant 0 : i32
    %2 = arith.cmpi ne, %1, %c0_i32_0 : i32
    scf.if %2 {
      %c0_20 = arith.constant 0 : index
      %c0_21 = arith.constant 0 : index
      %35 = vector.load %arg2[%c0_20, %c0_21] : memref<32x128xf32, #tpu.memory_space<vmem>>, vector<32x128xf32>
      %c0_22 = arith.constant 0 : index
      %c0_23 = arith.constant 0 : index
      %36 = vector.load %arg6[%c0_22, %c0_23] : memref<32x128xf32, #tpu.memory_space<vmem>>, vector<32x128xf32>
      tpu.vector_store %arg6[%c0_22, %c0_23], %35 {strides = array<i32>} : memref<32x128xf32, #tpu.memory_space<vmem>>, vector<32x128xf32>,
    } else {
    }
    %c0 = arith.constant 0 : index
    %c0_1 = arith.constant 0 : index
    %3 = vector.load %arg3[%c0, %c0_1] : memref<32x32xf32, #tpu.memory_space<vmem>>, vector<32x32xf32>
    %c0_2 = arith.constant 0 : index
    %c0_3 = arith.constant 0 : index
    %4 = vector.load %arg4[%c0_2, %c0_3] : memref<32x128xf32, #tpu.memory_space<vmem>>, vector<32x128xf32>
    %c0_4 = arith.constant 0 : index
    %c0_5 = arith.constant 0 : index
    %5 = vector.load %arg6[%c0_4, %c0_5] : memref<32x128xf32, #tpu.memory_space<vmem>>, vector<32x128xf32>
    %c0_i32_6 = arith.constant 0 : i32
    %cst = arith.constant dense<0.000000e+00> : vector<32x128xf32>
    %6 = tpu.matmul %3, %5, %cst {dimension_numbers = #tpu.dot_dimension_numbers<[1], [0], [0], [1], [0, 0, 1, 1], [], []>} : vector<32x32xf32>, vector<32x128xf32>, vector<32x128xf32> -> vector<32x128xf32>
    %7 = arith.addf %6, %4 : vector<32x128xf32>
    %8 = math.tanh %7 : vector<32x128xf32>
    %9 = arith.index_cast %c0_i32_6 : i32 to index
    %c0_7 = arith.constant 0 : index
    %c0_8 = arith.constant 0 : index
    %10 = vector.load %arg5[%9, %c0_7, %c0_8] : memref<4x32x128xf32, #tpu.memory_space<vmem>>, vector<1x32x128xf32>
    %11 = vector.shape_cast %10 : vector<1x32x128xf32> to vector<32x128xf32>
    %12 = vector.shape_cast %8 : vector<32x128xf32> to vector<1x32x128xf32>
    tpu.vector_store %arg5[%9, %c0_7, %c0_8], %12 {strides = array<i32>} : memref<4x32x128xf32, #tpu.memory_space<vmem>>, vector<1x32x128xf32>,
    %c1_i32 = arith.constant 1 : i32
    %cst_9 = arith.constant dense<0.000000e+00> : vector<32x128xf32>
    %13 = tpu.matmul %3, %8, %cst_9 {dimension_numbers = #tpu.dot_dimension_numbers<[1], [0], [0], [1], [0, 0, 1, 1], [], []>} : vector<32x32xf32>, vector<32x128xf32>, vector<32x128xf32> -> vector<32x128xf32>
    %14 = arith.addf %13, %4 : vector<32x128xf32>
    %15 = math.tanh %14 : vector<32x128xf32>
    %16 = arith.index_cast %c1_i32 : i32 to index
    %c0_10 = arith.constant 0 : index
    %c0_11 = arith.constant 0 : index
    %17 = vector.load %arg5[%16, %c0_10, %c0_11] : memref<4x32x128xf32, #tpu.memory_space<vmem>>, vector<1x32x128xf32>
    %18 = vector.shape_cast %17 : vector<1x32x128xf32> to vector<32x128xf32>
    %19 = vector.shape_cast %15 : vector<32x128xf32> to vector<1x32x128xf32>
    tpu.vector_store %arg5[%16, %c0_10, %c0_11], %19 {strides = array<i32>} : memref<4x32x128xf32, #tpu.memory_space<vmem>>, vector<1x32x128xf32>,
    %c2_i32 = arith.constant 2 : i32
    %cst_12 = arith.constant dense<0.000000e+00> : vector<32x128xf32>
    %20 = tpu.matmul %3, %15, %cst_12 {dimension_numbers = #tpu.dot_dimension_numbers<[1], [0], [0], [1], [0, 0, 1, 1], [], []>} : vector<32x32xf32>, vector<32x128xf32>, vector<32x128xf32> -> vector<32x128xf32>
    %21 = arith.addf %20, %4 : vector<32x128xf32>
    %22 = math.tanh %21 : vector<32x128xf32>
    %23 = arith.index_cast %c2_i32 : i32 to index
    %c0_13 = arith.constant 0 : index
    %c0_14 = arith.constant 0 : index
    %24 = vector.load %arg5[%23, %c0_13, %c0_14] : memref<4x32x128xf32, #tpu.memory_space<vmem>>, vector<1x32x128xf32>
    %25 = vector.shape_cast %24 : vector<1x32x128xf32> to vector<32x128xf32>
    %26 = vector.shape_cast %22 : vector<32x128xf32> to vector<1x32x128xf32>
    tpu.vector_store %arg5[%23, %c0_13, %c0_14], %26 {strides = array<i32>} : memref<4x32x128xf32, #tpu.memory_space<vmem>>, vector<1x32x128xf32>,
    %c3_i32 = arith.constant 3 : i32
    %cst_15 = arith.constant dense<0.000000e+00> : vector<32x128xf32>
    %27 = tpu.matmul %3, %22, %cst_15 {dimension_numbers = #tpu.dot_dimension_numbers<[1], [0], [0], [1], [0, 0, 1, 1], [], []>} : vector<32x32xf32>, vector<32x128xf32>, vector<32x128xf32> -> vector<32x128xf32>
    %28 = arith.addf %27, %4 : vector<32x128xf32>
    %29 = math.tanh %28 : vector<32x128xf32>
    %30 = arith.index_cast %c3_i32 : i32 to index
    %c0_16 = arith.constant 0 : index
    %c0_17 = arith.constant 0 : index
    %31 = vector.load %arg5[%30, %c0_16, %c0_17] : memref<4x32x128xf32, #tpu.memory_space<vmem>>, vector<1x32x128xf32>
    %32 = vector.shape_cast %31 : vector<1x32x128xf32> to vector<32x128xf32>
    %33 = vector.shape_cast %29 : vector<32x128xf32> to vector<1x32x128xf32>
    tpu.vector_store %arg5[%30, %c0_16, %c0_17], %33 {strides = array<i32>} : memref<4x32x128xf32, #tpu.memory_space<vmem>>, vector<1x32x128xf32>,
    %c4_i32 = arith.constant 4 : i32
    %c0_18 = arith.constant 0 : index
    %c0_19 = arith.constant 0 : index
    %34 = vector.load %arg6[%c0_18, %c0_19] : memref<32x128xf32, #tpu.memory_space<vmem>>, vector<32x128xf32>
    tpu.vector_store %arg6[%c0_18, %c0_19], %29 {strides = array<i32>} : memref<32x128xf32, #tpu.memory_space<vmem>>, vector<32x128xf32>,
    return
  }
  func.func @transform_0(%arg0: i32, %arg1: i32) -> (i32, i32) {
    %c0_i32 = arith.constant 0 : i32
    %c0_i32_0 = arith.constant 0 : i32
    return %c0_i32, %arg0 : i32, i32
  }
  func.func @transform_1(%arg0: i32, %arg1: i32) -> (i32, i32) {
    %c0_i32 = arith.constant 0 : i32
    %c0_i32_0 = arith.constant 0 : i32
    %c0_i32_1 = arith.constant 0 : i32
    return %c0_i32, %c0_i32_0 : i32, i32
  }
  func.func @transform_2(%arg0: i32, %arg1: i32) -> (i32, i32) {
    %c0_i32 = arith.constant 0 : i32
    %c0_i32_0 = arith.constant 0 : i32
    %c0_i32_1 = arith.constant 0 : i32
    return %c0_i32, %c0_i32_0 : i32, i32
  }
  func.func @transform_3(%arg0: i32, %arg1: i32) -> (i32, i32, i32) {
    %c0_i32 = arith.constant 0 : i32
    %c0_i32_0 = arith.constant 0 : i32
    return %arg1, %c0_i32, %arg0 : i32, i32, i32
  }
}

</mosaic_0001>

<llo_original>
// kernel: tpu_custom_call.1
$region0: #{tpu_custom_call.1}
  #allocation0 [shape = 'u32[]', space=smem, size = 0x4, offset = 0x4, fixed_abs, tag = 'smem constant byte address 0x4 - core index']
  #allocation1 [shape = 'u32[144,128]{1,0:T(1,128)}', space=vmem, size = 0x12000, scoped, tag = 'internal scratch']
  #allocation2 [shape = 'f32[32,128]{1,0:T(8,128)}', space=vmem, size = 0x4000, scoped, tag = 'scratch operand']
  %s0 = inlined_call_operand.hbm [shape: f32[32,128], index: 0, kind: input, shape index: {}]
  %s1 = inlined_call_operand.hbm [shape: f32[32,32], index: 1, kind: input, shape index: {}]
  %s2 = inlined_call_operand.hbm [shape: f32[32,128], index: 2, kind: input, shape index: {}]
  %s3 = inlined_call_operand.hbm [shape: f32[4,32,128], index: 3, kind: output, shape index: {}]
  %s4 = sld [smem:[#allocation0]]
  $region38: #{tpu_custom_call.1} parent=0
    _
  %s6 = ssub.s32 1, %s4
  %s7 = scalar_select 0, %s6, %s4
  $region1: #{tpu_custom_call.1} parent=0
    #allocation3 [shape = 'u8[16384]{0}', space=vmem, size = 0x4000, scoped, tag = 'input window, operand 0, single buffered']
    #allocation4 [shape = 's32[1]{0}', space=sflag, size = 0x4, scoped, tag = 'scoped memory for tpu_custom_call.1']
    #allocation5 [shape = 's32[1]{0}', space=sflag, size = 0x4, scoped, tag = 'scoped memory for tpu_custom_call.1']
    #allocation6 [shape = 'u8[16384]{0}', space=vmem, size = 0x4000, scoped, tag = 'input window, operand 1, single buffered']
    #allocation7 [shape = 's32[1]{0}', space=sflag, size = 0x4, scoped, tag = 'scoped memory for tpu_custom_call.1']
    #allocation8 [shape = 'u8[16384]{0}', space=vmem, size = 0x4000, scoped, tag = 'input window, operand 2, single buffered']
    #allocation9 [shape = 'u8[65536]{0}', space=vmem, size = 0x10000, scoped, tag = 'output window, operand 0, single buffered']
    %8 = vsyncpa [#allocation4], 0
    %9 = vsyncpa [#allocation7], 0
    %10 = vsyncpa [#allocation5], 0
    // Predicated region
    $region2: #{tpu_custom_call.1} parent=1 // pred_check
      _
    $region3: #{tpu_custom_call.1} parent=1 // pred_check_branch
      %12 = sbr.rel (0) target = $region5
    $region4: #{tpu_custom_call.1} parent=1 // pred_region
      %s14 = ssub.s32 512, 512
      %15 = vsyncadd [#allocation4], %s14
      %s16 = sshll.u32 [#allocation3], 4
      %s17 = int_to_ptr.vmem [resolvable:$true] %s16
      %22 = dma.hbm_to_vmem [thread:$0]  %s0, 512, %s17, [#allocation4], 128, 128, 8
    $region5: #{tpu_custom_call.1} parent=1 // pred_fallthru
      _
    // Predicated region
    $region6: #{tpu_custom_call.1} parent=1 // pred_check
      _
    $region7: #{tpu_custom_call.1} parent=1 // pred_check_branch
      %24 = sbr.rel (0) target = $region9
    $region8: #{tpu_custom_call.1} parent=1 // pred_region
      %s26 = ssub.s32 512, 512
      %27 = vsyncadd [#allocation7], %s26
      %s28 = sshll.u32 [#allocation6], 4
      %s29 = int_to_ptr.vmem [resolvable:$true] %s28
      %34 = dma.hbm_to_vmem [thread:$0]  %s1, 512, %s29, [#allocation7], 128, 128, 8
    $region9: #{tpu_custom_call.1} parent=1 // pred_fallthru
      _
    // Predicated region
    $region10: #{tpu_custom_call.1} parent=1 // pred_check
      _
    $region11: #{tpu_custom_call.1} parent=1 // pred_check_branch
      %36 = sbr.rel (0) target = $region13
    $region12: #{tpu_custom_call.1} parent=1 // pred_region
      %s38 = ssub.s32 512, 512
      %39 = vsyncadd [#allocation7], %s38
      %s40 = sshll.u32 [#allocation8], 4
      %s41 = int_to_ptr.vmem [resolvable:$true] %s40
      %46 = dma.hbm_to_vmem [thread:$0]  %s2, 512, %s41, [#allocation7], 128, 128, 8
    $region13: #{tpu_custom_call.1} parent=1 // pred_fallthru
      _
    // Predicated region
    $region14: #{tpu_custom_call.1} parent=1 // pred_check
      _
    $region15: #{tpu_custom_call.1} parent=1 // pred_check_branch
      %48 = sbr.rel (0) target = $region17
    $region16: #{tpu_custom_call.1} parent=1 // pred_region
      %49 = dma.done [#allocation4], 512
    $region17: #{tpu_custom_call.1} parent=1 // pred_fallthru
      _
    // Predicated region
    $region18: #{tpu_custom_call.1} parent=1 // pred_check
      _
    $region19: #{tpu_custom_call.1} parent=1 // pred_check_branch
      %51 = sbr.rel (0) target = $region21
    $region20: #{tpu_custom_call.1} parent=1 // pred_region
      %52 = dma.done [#allocation7], 512
    $region21: #{tpu_custom_call.1} parent=1 // pred_fallthru
      _
    // Predicated region
    $region22: #{tpu_custom_call.1} parent=1 // pred_check
      _
    $region23: #{tpu_custom_call.1} parent=1 // pred_check_branch
      %54 = sbr.rel (0) target = $region25
    $region24: #{tpu_custom_call.1} parent=1 // pred_region
      %55 = dma.done [#allocation7], 512
    $region25: #{tpu_custom_call.1} parent=1 // pred_fallthru
      _
    %p56 = scmp.eq.s32.totalorder 0, 0
    // Predicated region
    $region26: #{tpu_custom_call.1} parent=1 // pred_check
      %p57 = pneg %p56
    $region27: #{tpu_custom_call.1} parent=1 // pred_check_branch
      %59 = sbr.rel (%p57) target = $region29
    $region28: #{tpu_custom_call.1} parent=1 // pred_region
      %v60 = vld [vmem:[#allocation3] sm:$0xff]
      %v61 = vld [vmem:[#allocation3 + $0x8] sm:$0xff]
      %v62 = vld [vmem:[#allocation3 + $0x10] sm:$0xff]
      %v63 = vld [vmem:[#allocation3 + $0x18] sm:$0xff]
      %64 = vst [vmem:[#allocation2] sm:$0xff] %v60
      %65 = vst [vmem:[#allocation2 + $0x8] sm:$0xff] %v61
      %66 = vst [vmem:[#allocation2 + $0x10] sm:$0xff] %v62
      %67 = vst [vmem:[#allocation2 + $0x18] sm:$0xff] %v63
    $region29: #{tpu_custom_call.1} parent=1 // pred_fallthru
      _
    %v68 = vld [vmem:[#allocation6] sm:$0xff]
    %v69 = vld [vmem:[#allocation6 + $0x8] sm:$0xff]
    %v70 = vld [vmem:[#allocation6 + $0x10] sm:$0xff]
    %v71 = vld [vmem:[#allocation6 + $0x18] sm:$0xff]
    %v72 = vld [vmem:[#allocation8] sm:$0xff]
    %v73 = vld [vmem:[#allocation8 + $0x8] sm:$0xff]
    %v74 = vld [vmem:[#allocation8 + $0x10] sm:$0xff]
    %v75 = vld [vmem:[#allocation8 + $0x18] sm:$0xff]
    %v76 = vld [vmem:[#allocation2] sm:$0xff]
    %v77 = vld [vmem:[#allocation2 + $0x8] sm:$0xff]
    %v78 = vld [vmem:[#allocation2 + $0x10] sm:$0xff]
    %v79 = vld [vmem:[#allocation2 + $0x18] sm:$0xff]
    %vm80 = vcmask 261120
    %v82 = vsel %vm80, %v68, 0
    %v85 = vsel %vm80, %v69, 0
    %v88 = vsel %vm80, %v70, 0
    %v91 = vsel %vm80, %v71, 0
    %93 = vmatprep.subr.mxu0 0.0
    %94 = vmatpush1.msra.mxu0 0.0
    %95 = vmatprep.subr.mxu0 0.0
    %96 = vmatpush1.msra.mxu0 0.0
    %97 = vmatprep.subr.mxu0 0.0
    %98 = vmatpush1.msra.mxu0 0.0
    %99 = vmatprep.subr.mxu0 0.0
    %100 = vmatpush1.msra.mxu0 0.0
    %101 = vmatprep.subr.mxu0 0.0
    %102 = vmatpush1.msra.mxu0 0.0
    %103 = vmatprep.subr.mxu0 0.0
    %104 = vmatpush1.msra.mxu0 0.0
    %105 = vmatprep.subr.mxu0 0.0
    %106 = vmatpush1.msra.mxu0 0.0
    %107 = vmatprep.subr.mxu0 0.0
    %108 = vmatpush1.msra.mxu0 0.0
    %109 = vmatprep.subr.mxu0 0.0
    %110 = vmatpush1.msra.mxu0 0.0
    %111 = vmatprep.subr.mxu0 0.0
    %112 = vmatpush1.msra.mxu0 0.0
    %113 = vmatprep.subr.mxu0 0.0
    %114 = vmatpush1.msra.mxu0 0.0
    %115 = vmatprep.subr.mxu0 0.0
    %116 = vmatpush1.msra.mxu0 0.0
    %117 = vmatprep.subr.mxu0 0.0
    %118 = vmatpush1.msra.mxu0 %v79
    %119 = vmatprep.subr.mxu0 0.0
    %120 = vmatpush1.msra.mxu0 %v78
    %121 = vmatprep.subr.mxu0 0.0
    %122 = vmatpush1.msra.mxu0 %v77
    %123 = vmatprep.subr.mxu0 0.0
    %124 = vmatpush1.msra.mxu0 %v76
    %125 = vmatprep.subr.mxu0 0.0
    %126 = vmatpush2.msra.mxu0 0.0
    %127 = vmatprep.subr.mxu0 0.0
    %128 = vmatpush2.msra.mxu0 0.0
    %129 = vmatprep.subr.mxu0 0.0
    %130 = vmatpush2.msra.mxu0 0.0
    %131 = vmatprep.subr.mxu0 0.0
    %132 = vmatpush2.msra.mxu0 0.0
    %133 = vmatprep.subr.mxu0 0.0
    %134 = vmatpush2.msra.mxu0 0.0
    %135 = vmatprep.subr.mxu0 0.0
    %136 = vmatpush2.msra.mxu0 0.0
    %137 = vmatprep.subr.mxu0 0.0
    %138 = vmatpush2.msra.mxu0 0.0
    %139 = vmatprep.subr.mxu0 0.0
    %140 = vmatpush2.msra.mxu0 0.0
    %141 = vmatprep.subr.mxu0 0.0
    %142 = vmatpush2.msra.mxu0 0.0
    %143 = vmatprep.subr.mxu0 0.0
    %144 = vmatpush2.msra.mxu0 0.0
    %145 = vmatprep.subr.mxu0 0.0
    %146 = vmatpush2.msra.mxu0 0.0
    %147 = vmatprep.subr.mxu0 0.0
    %148 = vmatpush2.msra.mxu0 0.0
    %149 = vmatprep.subr.mxu0 0.0
    %150 = vmatpush2.msra.mxu0 0.0
    %151 = vmatprep.subr.mxu0 0.0
    %152 = vmatpush2.msra.mxu0 0.0
    %153 = vmatprep.subr.mxu0 0.0
    %154 = vmatpush2.msra.mxu0 0.0
    %155 = vmatprep.subr.mxu0 0.0
    %156 = vmatpush2.msra.mxu0 0.0
    %157 = vmatprep.mubr.f32.mxu0 0.0
    %158 = vmatmul.mubr.f32.gmra.mxu0 %v82
    %v159 = vpop.f32.mrf.mxu0
    %v160 = vadd.f32 %v72, %v159
    %v161 = vpop.f32.mrf.mxu0
    %162 = vmatprep.mubr.f32.mxu0 0.0
    %163 = vmatmul.mubr.f32.gmra.mxu0 %v85
    %v164 = vpop.f32.mrf.mxu0
    %v165 = vadd.f32 %v73, %v164
    %v166 = vpop.f32.mrf.mxu0
    %167 = vmatprep.mubr.f32.mxu0 0.0
    %168 = vmatmul.mubr.f32.gmra.mxu0 %v88
    %v169 = vpop.f32.mrf.mxu0
    %v170 = vadd.f32 %v74, %v169
    %v171 = vpop.f32.mrf.mxu0
    %172 = vmatprep.mubr.f32.mxu0 0.0
    %173 = vmatmul.mubr.f32.gmra.mxu0 %v91
    %v174 = vpop.f32.mrf.mxu0
    %v175 = vadd.f32 %v75, %v174
    %v176 = vpop.f32.mrf.mxu0
    %177 = vdwg.mxu0
    %v178 = vtanh.pop %v160
    %v179 = vtanh.pop %v165
    %v180 = vtanh.pop %v170
    %v181 = vtanh.pop %v175
    %182 = vst [vmem:[#allocation9] sm:$0xff] %v178
    %183 = vst [vmem:[#allocation9 + $0x8] sm:$0xff] %v179
    %184 = vst [vmem:[#allocation9 + $0x10] sm:$0xff] %v180
    %185 = vst [vmem:[#allocation9 + $0x18] sm:$0xff] %v181
    %186 = vmatprep.subr.mxu0 0.0
    %187 = vmatpush1.msra.mxu0 0.0
    %188 = vmatprep.subr.mxu0 0.0
    %189 = vmatpush1.msra.mxu0 0.0
    %190 = vmatprep.subr.mxu0 0.0
    %191 = vmatpush1.msra.mxu0 0.0
    %192 = vmatprep.subr.mxu0 0.0
    %193 = vmatpush1.msra.mxu0 0.0
    %194 = vmatprep.subr.mxu0 0.0
    %195 = vmatpush1.msra.mxu0 0.0
    %196 = vmatprep.subr.mxu0 0.0
    %197 = vmatpush1.msra.mxu0 0.0
    %198 = vmatprep.subr.mxu0 0.0
    %199 = vmatpush1.msra.mxu0 0.0
    %200 = vmatprep.subr.mxu0 0.0
    %201 = vmatpush1.msra.mxu0 0.0
    %202 = vmatprep.subr.mxu0 0.0
    %203 = vmatpush1.msra.mxu0 0.0
    %204 = vmatprep.subr.mxu0 0.0
    %205 = vmatpush1.msra.mxu0 0.0
    %206 = vmatprep.subr.mxu0 0.0
    %207 = vmatpush1.msra.mxu0 0.0
    %208 = vmatprep.subr.mxu0 0.0
    %209 = vmatpush1.msra.mxu0 0.0
    %210 = vmatprep.subr.mxu0 0.0
    %211 = vmatpush1.msra.mxu0 %v181
    %212 = vmatprep.subr.mxu0 0.0
    %213 = vmatpush1.msra.mxu0 %v180
    %214 = vmatprep.subr.mxu0 0.0
    %215 = vmatpush1.msra.mxu0 %v179
    %216 = vmatprep.subr.mxu0 0.0
    %217 = vmatpush1.msra.mxu0 %v178
    %218 = vmatprep.subr.mxu0 0.0
    %219 = vmatpush2.msra.mxu0 0.0
    %220 = vmatprep.subr.mxu0 0.0
    %221 = vmatpush2.msra.mxu0 0.0
    %222 = vmatprep.subr.mxu0 0.0
    %223 = vmatpush2.msra.mxu0 0.0
    %224 = vmatprep.subr.mxu0 0.0
    %225 = vmatpush2.msra.mxu0 0.0
    %226 = vmatprep.subr.mxu0 0.0
    %227 = vmatpush2.msra.mxu0 0.0
    %228 = vmatprep.subr.mxu0 0.0
    %229 = vmatpush2.msra.mxu0 0.0
    %230 = vmatprep.subr.mxu0 0.0
    %231 = vmatpush2.msra.mxu0 0.0
    %232 = vmatprep.subr.mxu0 0.0
    %233 = vmatpush2.msra.mxu0 0.0
    %234 = vmatprep.subr.mxu0 0.0
    %235 = vmatpush2.msra.mxu0 0.0
    %236 = vmatprep.subr.mxu0 0.0
    %237 = vmatpush2.msra.mxu0 0.0
    %238 = vmatprep.subr.mxu0 0.0
    %239 = vmatpush2.msra.mxu0 0.0
    %240 = vmatprep.subr.mxu0 0.0
    %241 = vmatpush2.msra.mxu0 0.0
    %242 = vmatprep.subr.mxu0 0.0
    %243 = vmatpush2.msra.mxu0 0.0
    %244 = vmatprep.subr.mxu0 0.0
    %245 = vmatpush2.msra.mxu0 0.0
    %246 = vmatprep.subr.mxu0 0.0
    %247 = vmatpush2.msra.mxu0 0.0
    %248 = vmatprep.subr.mxu0 0.0
    %249 = vmatpush2.msra.mxu0 0.0
    %250 = vmatprep.mubr.f32.mxu0 0.0
    %251 = vmatmul.mubr.f32.gmra.mxu0 %v82
    %v252 = vpop.f32.mrf.mxu0
    %v253 = vadd.f32 %v72, %v252
    %v254 = vpop.f32.mrf.mxu0
    %255 = vmatprep.mubr.f32.mxu0 0.0
    %256 = vmatmul.mubr.f32.gmra.mxu0 %v85
    %v257 = vpop.f32.mrf.mxu0
    %v258 = vadd.f32 %v73, %v257
    %v259 = vpop.f32.mrf.mxu0
    %260 = vmatprep.mubr.f32.mxu0 0.0
    %261 = vmatmul.mubr.f32.gmra.mxu0 %v88
    %v262 = vpop.f32.mrf.mxu0
    %v263 = vadd.f32 %v74, %v262
    %v264 = vpop.f32.mrf.mxu0
    %265 = vmatprep.mubr.f32.mxu0 0.0
    %266 = vmatmul.mubr.f32.gmra.mxu0 %v91
    %v267 = vpop.f32.mrf.mxu0
    %v268 = vadd.f32 %v75, %v267
    %v269 = vpop.f32.mrf.mxu0
    %270 = vdwg.mxu0
    %v271 = vtanh.pop %v253
    %v272 = vtanh.pop %v258
    %v273 = vtanh.pop %v263
    %v274 = vtanh.pop %v268
    %s275 = scalar_lea.vmem [#allocation9], 32
    %276 = vst [vmem:[%s275] sm:$0xff] %v271
    %277 = vst [vmem:[%s275 + $0x8] sm:$0xff] %v272
    %278 = vst [vmem:[%s275 + $0x10] sm:$0xff] %v273
    %279 = vst [vmem:[%s275 + $0x18] sm:$0xff] %v274
    %280 = vmatprep.subr.mxu0 0.0
    %281 = vmatpush1.msra.mxu0 0.0
    %282 = vmatprep.subr.mxu0 0.0
    %283 = vmatpush1.msra.mxu0 0.0
    %284 = vmatprep.subr.mxu0 0.0
    %285 = vmatpush1.msra.mxu0 0.0
    %286 = vmatprep.subr.mxu0 0.0
    %287 = vmatpush1.msra.mxu0 0.0
    %288 = vmatprep.subr.mxu0 0.0
    %289 = vmatpush1.msra.mxu0 0.0
    %290 = vmatprep.subr.mxu0 0.0
    %291 = vmatpush1.msra.mxu0 0.0
    %292 = vmatprep.subr.mxu0 0.0
    %293 = vmatpush1.msra.mxu0 0.0
    %294 = vmatprep.subr.mxu0 0.0
    %295 = vmatpush1.msra.mxu0 0.0
    %296 = vmatprep.subr.mxu0 0.0
    %297 = vmatpush1.msra.mxu0 0.0
    %298 = vmatprep.subr.mxu0 0.0
    %299 = vmatpush1.msra.mxu0 0.0
    %300 = vmatprep.subr.mxu0 0.0
    %301 = vmatpush1.msra.mxu0 0.0
    %302 = vmatprep.subr.mxu0 0.0
    %303 = vmatpush1.msra.mxu0 0.0
    %304 = vmatprep.subr.mxu0 0.0
    %305 = vmatpush1.msra.mxu0 %v274
    %306 = vmatprep.subr.mxu0 0.0
    %307 = vmatpush1.msra.mxu0 %v273
    %308 = vmatprep.subr.mxu0 0.0
    %309 = vmatpush1.msra.mxu0 %v272
    %310 = vmatprep.subr.mxu0 0.0
    %311 = vmatpush1.msra.mxu0 %v271
    %312 = vmatprep.subr.mxu0 0.0
    %313 = vmatpush2.msra.mxu0 0.0
    %314 = vmatprep.subr.mxu0 0.0
    %315 = vmatpush2.msra.mxu0 0.0
    %316 = vmatprep.subr.mxu0 0.0
    %317 = vmatpush2.msra.mxu0 0.0
    %318 = vmatprep.subr.mxu0 0.0
    %319 = vmatpush2.msra.mxu0 0.0
    %320 = vmatprep.subr.mxu0 0.0
    %321 = vmatpush2.msra.mxu0 0.0
    %322 = vmatprep.subr.mxu0 0.0
    %323 = vmatpush2.msra.mxu0 0.0
    %324 = vmatprep.subr.mxu0 0.0
    %325 = vmatpush2.msra.mxu0 0.0
    %326 = vmatprep.subr.mxu0 0.0
    %327 = vmatpush2.msra.mxu0 0.0
    %328 = vmatprep.subr.mxu0 0.0
    %329 = vmatpush2.msra.mxu0 0.0
    %330 = vmatprep.subr.mxu0 0.0
    %331 = vmatpush2.msra.mxu0 0.0
    %332 = vmatprep.subr.mxu0 0.0
    %333 = vmatpush2.msra.mxu0 0.0
    %334 = vmatprep.subr.mxu0 0.0
    %335 = vmatpush2.msra.mxu0 0.0
    %336 = vmatprep.subr.mxu0 0.0
    %337 = vmatpush2.msra.mxu0 0.0
    %338 = vmatprep.subr.mxu0 0.0
    %339 = vmatpush2.msra.mxu0 0.0
    %340 = vmatprep.subr.mxu0 0.0
    %341 = vmatpush2.msra.mxu0 0.0
    %342 = vmatprep.subr.mxu0 0.0
    %343 = vmatpush2.msra.mxu0 0.0
    %344 = vmatprep.mubr.f32.mxu0 0.0
    %345 = vmatmul.mubr.f32.gmra.mxu0 %v82
    %v346 = vpop.f32.mrf.mxu0
    %v347 = vadd.f32 %v72, %v346
    %v348 = vpop.f32.mrf.mxu0
    %349 = vmatprep.mubr.f32.mxu0 0.0
    %350 = vmatmul.mubr.f32.gmra.mxu0 %v85
    %v351 = vpop.f32.mrf.mxu0
    %v352 = vadd.f32 %v73, %v351
    %v353 = vpop.f32.mrf.mxu0
    %354 = vmatprep.mubr.f32.mxu0 0.0
    %355 = vmatmul.mubr.f32.gmra.mxu0 %v88
    %v356 = vpop.f32.mrf.mxu0
    %v357 = vadd.f32 %v74, %v356
    %v358 = vpop.f32.mrf.mxu0
    %359 = vmatprep.mubr.f32.mxu0 0.0
    %360 = vmatmul.mubr.f32.gmra.mxu0 %v91
    %v361 = vpop.f32.mrf.mxu0
    %v362 = vadd.f32 %v75, %v361
    %v363 = vpop.f32.mrf.mxu0
    %364 = vdwg.mxu0
    %v365 = vtanh.pop %v347
    %v366 = vtanh.pop %v352
    %v367 = vtanh.pop %v357
    %v368 = vtanh.pop %v362
    %s369 = scalar_lea.vmem [#allocation9], 64
    %370 = vst [vmem:[%s369] sm:$0xff] %v365
    %371 = vst [vmem:[%s369 + $0x8] sm:$0xff] %v366
    %372 = vst [vmem:[%s369 + $0x10] sm:$0xff] %v367
    %373 = vst [vmem:[%s369 + $0x18] sm:$0xff] %v368
    %374 = vmatprep.subr.mxu0 0.0
    %375 = vmatpush1.msra.mxu0 0.0
    %376 = vmatprep.subr.mxu0 0.0
    %377 = vmatpush1.msra.mxu0 0.0
    %378 = vmatprep.subr.mxu0 0.0
    %379 = vmatpush1.msra.mxu0 0.0
    %380 = vmatprep.subr.mxu0 0.0
    %381 = vmatpush1.msra.mxu0 0.0
    %382 = vmatprep.subr.mxu0 0.0
    %383 = vmatpush1.msra.mxu0 0.0
    %384 = vmatprep.subr.mxu0 0.0
    %385 = vmatpush1.msra.mxu0 0.0
    %386 = vmatprep.subr.mxu0 0.0
    %387 = vmatpush1.msra.mxu0 0.0
    %388 = vmatprep.subr.mxu0 0.0
    %389 = vmatpush1.msra.mxu0 0.0
    %390 = vmatprep.subr.mxu0 0.0
    %391 = vmatpush1.msra.mxu0 0.0
    %392 = vmatprep.subr.mxu0 0.0
    %393 = vmatpush1.msra.mxu0 0.0
    %394 = vmatprep.subr.mxu0 0.0
    %395 = vmatpush1.msra.mxu0 0.0
    %396 = vmatprep.subr.mxu0 0.0
    %397 = vmatpush1.msra.mxu0 0.0
    %398 = vmatprep.subr.mxu0 0.0
    %399 = vmatpush1.msra.mxu0 %v368
    %400 = vmatprep.subr.mxu0 0.0
    %401 = vmatpush1.msra.mxu0 %v367
    %402 = vmatprep.subr.mxu0 0.0
    %403 = vmatpush1.msra.mxu0 %v366
    %404 = vmatprep.subr.mxu0 0.0
    %405 = vmatpush1.msra.mxu0 %v365
    %406 = vmatprep.subr.mxu0 0.0
    %407 = vmatpush2.msra.mxu0 0.0
    %408 = vmatprep.subr.mxu0 0.0
    %409 = vmatpush2.msra.mxu0 0.0
    %410 = vmatprep.subr.mxu0 0.0
    %411 = vmatpush2.msra.mxu0 0.0
    %412 = vmatprep.subr.mxu0 0.0
    %413 = vmatpush2.msra.mxu0 0.0
    %414 = vmatprep.subr.mxu0 0.0
    %415 = vmatpush2.msra.mxu0 0.0
    %416 = vmatprep.subr.mxu0 0.0
    %417 = vmatpush2.msra.mxu0 0.0
    %418 = vmatprep.subr.mxu0 0.0
    %419 = vmatpush2.msra.mxu0 0.0
    %420 = vmatprep.subr.mxu0 0.0
    %421 = vmatpush2.msra.mxu0 0.0
    %422 = vmatprep.subr.mxu0 0.0
    %423 = vmatpush2.msra.mxu0 0.0
    %424 = vmatprep.subr.mxu0 0.0
    %425 = vmatpush2.msra.mxu0 0.0
    %426 = vmatprep.subr.mxu0 0.0
    %427 = vmatpush2.msra.mxu0 0.0
    %428 = vmatprep.subr.mxu0 0.0
    %429 = vmatpush2.msra.mxu0 0.0
    %430 = vmatprep.subr.mxu0 0.0
    %431 = vmatpush2.msra.mxu0 0.0
    %432 = vmatprep.subr.mxu0 0.0
    %433 = vmatpush2.msra.mxu0 0.0
    %434 = vmatprep.subr.mxu0 0.0
    %435 = vmatpush2.msra.mxu0 0.0
    %436 = vmatprep.subr.mxu0 0.0
    %437 = vmatpush2.msra.mxu0 0.0
    %438 = vmatprep.mubr.f32.mxu0 0.0
    %439 = vmatmul.mubr.f32.gmra.mxu0 %v82
    %v440 = vpop.f32.mrf.mxu0
    %v441 = vadd.f32 %v72, %v440
    %v442 = vpop.f32.mrf.mxu0
    %443 = vmatprep.mubr.f32.mxu0 0.0
    %444 = vmatmul.mubr.f32.gmra.mxu0 %v85
    %v445 = vpop.f32.mrf.mxu0
    %v446 = vadd.f32 %v73, %v445
    %v447 = vpop.f32.mrf.mxu0
    %448 = vmatprep.mubr.f32.mxu0 0.0
    %449 = vmatmul.mubr.f32.gmra.mxu0 %v88
    %v450 = vpop.f32.mrf.mxu0
    %v451 = vadd.f32 %v74, %v450
    %v452 = vpop.f32.mrf.mxu0
    %453 = vmatprep.mubr.f32.mxu0 0.0
    %454 = vmatmul.mubr.f32.gmra.mxu0 %v91
    %v455 = vpop.f32.mrf.mxu0
    %v456 = vadd.f32 %v75, %v455
    %v457 = vpop.f32.mrf.mxu0
    %458 = vdwg.mxu0
    %v459 = vtanh.pop %v441
    %v460 = vtanh.pop %v446
    %v461 = vtanh.pop %v451
    %v462 = vtanh.pop %v456
    %s463 = scalar_lea.vmem [#allocation9], 96
    %464 = vst [vmem:[%s463] sm:$0xff] %v459
    %465 = vst [vmem:[%s463 + $0x8] sm:$0xff] %v460
    %466 = vst [vmem:[%s463 + $0x10] sm:$0xff] %v461
    %467 = vst [vmem:[%s463 + $0x18] sm:$0xff] %v462
    %468 = vst [vmem:[#allocation2] sm:$0xff] %v459
    %469 = vst [vmem:[#allocation2 + $0x8] sm:$0xff] %v460
    %470 = vst [vmem:[#allocation2 + $0x10] sm:$0xff] %v461
    %471 = vst [vmem:[#allocation2 + $0x18] sm:$0xff] %v462
    // Predicated region
    $region30: #{tpu_custom_call.1} parent=1 // pred_check
      _
    $region31: #{tpu_custom_call.1} parent=1 // pred_check_branch
      %473 = sbr.rel (0) target = $region33
    $region32: #{tpu_custom_call.1} parent=1 // pred_region
      %s475 = ssub.s32 2048, 2048
      %476 = vsyncadd [#allocation5], %s475
      %s477 = sshll.u32 [#allocation9], 4
      %s478 = int_to_ptr.vmem [resolvable:$true] %s477
      %483 = dma.vmem_to_hbm [thread:$0]  %s478, 2048, %s3, [#allocation5], 128, 128, 8
    $region33: #{tpu_custom_call.1} parent=1 // pred_fallthru
      _
    // Predicated region
    $region34: #{tpu_custom_call.1} parent=1 // pred_check
      _
    $region35: #{tpu_custom_call.1} parent=1 // pred_check_branch
      %485 = sbr.rel (0) target = $region37
    $region36: #{tpu_custom_call.1} parent=1 // pred_region
      %486 = dma.done [#allocation5], 2048
    $region37: #{tpu_custom_call.1} parent=1 // pred_fallthru
      _
    %487 = vsyncpa [#allocation4], 1
    %488 = vsyncpa [#allocation7], 1
    %489 = vsyncpa [#allocation5], 1

// kernel: tpu_custom_call.1
$region0: #{tpu_custom_call.1}
  #allocation0 [shape = 'u32[]', space=smem, size = 0x4, offset = 0x4, fixed_abs, tag = 'smem constant byte address 0x4 - core index']
  #allocation1 [shape = 'u32[144,128]{1,0:T(1,128)}', space=vmem, size = 0x12000, scoped, tag = 'internal scratch']
  #allocation2 [shape = 'f32[32,128]{1,0:T(8,128)}', space=vmem, size = 0x4000, scoped, tag = 'scratch operand']
  %s0 = inlined_call_operand.hbm [shape: f32[32,128], index: 0, kind: input, shape index: {}]
  %s1 = inlined_call_operand.hbm [shape: f32[32,32], index: 1, kind: input, shape index: {}]
  %s2 = inlined_call_operand.hbm [shape: f32[32,128], index: 2, kind: input, shape index: {}]
  %s3 = inlined_call_operand.hbm [shape: f32[4,32,128], index: 3, kind: output, shape index: {}]
  %s4 = sld [smem:[#allocation0]]
  $region38: #{tpu_custom_call.1} parent=0
    _
  %s6 = ssub.s32 1, %s4
  %s7 = scalar_select 0, %s6, %s4
  $region1: #{tpu_custom_call.1} parent=0
    #allocation3 [shape = 'u8[16384]{0}', space=vmem, size = 0x4000, scoped, tag = 'input window, operand 0, single buffered']
    #allocation4 [shape = 's32[1]{0}', space=sflag, size = 0x4, scoped, tag = 'scoped memory for tpu_custom_call.1']
    #allocation5 [shape = 's32[1]{0}', space=sflag, size = 0x4, scoped, tag = 'scoped memory for tpu_custom_call.1']
    #allocation6 [shape = 'u8[16384]{0}', space=vmem, size = 0x4000, scoped, tag = 'input window, operand 1, single buffered']
    #allocation7 [shape = 's32[1]{0}', space=sflag, size = 0x4, scoped, tag = 'scoped memory for tpu_custom_call.1']
    #allocation8 [shape = 'u8[16384]{0}', space=vmem, size = 0x4000, scoped, tag = 'input window, operand 2, single buffered']
    #allocation9 [shape = 'u8[65536]{0}', space=vmem, size = 0x10000, scoped, tag = 'output window, operand 0, single buffered']
    %8 = vsyncpa [#allocation4], 0
    %9 = vsyncpa [#allocation7], 0
    %10 = vsyncpa [#allocation5], 0
    // Predicated region
    $region2: #{tpu_custom_call.1} parent=1 // pred_check
      _
    $region3: #{tpu_custom_call.1} parent=1 // pred_check_branch
      %12 = sbr.rel (0) target = $region5
    $region4: #{tpu_custom_call.1} parent=1 // pred_region
      %s14 = ssub.s32 512, 512
      %15 = vsyncadd [#allocation4], %s14
      %s16 = sshll.u32 [#allocation3], 4
      %s17 = int_to_ptr.vmem [resolvable:$true] %s16
      %22 = dma.hbm_to_vmem [thread:$0]  %s0, 512, %s17, [#allocation4], 128, 128, 8
    $region5: #{tpu_custom_call.1} parent=1 // pred_fallthru
      _
    // Predicated region
    $region6: #{tpu_custom_call.1} parent=1 // pred_check
      _
    $region7: #{tpu_custom_call.1} parent=1 // pred_check_branch
      %24 = sbr.rel (0) target = $region9
    $region8: #{tpu_custom_call.1} parent=1 // pred_region
      %s26 = ssub.s32 512, 512
      %27 = vsyncadd [#allocation7], %s26
      %s28 = sshll.u32 [#allocation6], 4
      %s29 = int_to_ptr.vmem [resolvable:$true] %s28
      %34 = dma.hbm_to_vmem [thread:$0]  %s1, 512, %s29, [#allocation7], 128, 128, 8
    $region9: #{tpu_custom_call.1} parent=1 // pred_fallthru
      _
    // Predicated region
    $region10: #{tpu_custom_call.1} parent=1 // pred_check
      _
    $region11: #{tpu_custom_call.1} parent=1 // pred_check_branch
      %36 = sbr.rel (0) target = $region13
    $region12: #{tpu_custom_call.1} parent=1 // pred_region
      %s38 = ssub.s32 512, 512
      %39 = vsyncadd [#allocation7], %s38
      %s40 = sshll.u32 [#allocation8], 4
      %s41 = int_to_ptr.vmem [resolvable:$true] %s40
      %46 = dma.hbm_to_vmem [thread:$0]  %s2, 512, %s41, [#allocation7], 128, 128, 8
    $region13: #{tpu_custom_call.1} parent=1 // pred_fallthru
      _
    // Predicated region
    $region14: #{tpu_custom_call.1} parent=1 // pred_check
      _
    $region15: #{tpu_custom_call.1} parent=1 // pred_check_branch
      %48 = sbr.rel (0) target = $region17
    $region16: #{tpu_custom_call.1} parent=1 // pred_region
      %49 = dma.done [#allocation4], 512
    $region17: #{tpu_custom_call.1} parent=1 // pred_fallthru
      _
    // Predicated region
    $region18: #{tpu_custom_call.1} parent=1 // pred_check
      _
    $region19: #{tpu_custom_call.1} parent=1 // pred_check_branch
      %51 = sbr.rel (0) target = $region21
    $region20: #{tpu_custom_call.1} parent=1 // pred_region
      %52 = dma.done [#allocation7], 512
    $region21: #{tpu_custom_call.1} parent=1 // pred_fallthru
      _
    // Predicated region
    $region22: #{tpu_custom_call.1} parent=1 // pred_check
      _
    $region23: #{tpu_custom_call.1} parent=1 // pred_check_branch
      %54 = sbr.rel (0) target = $region25
    $region24: #{tpu_custom_call.1} parent=1 // pred_region
      %55 = dma.done [#allocation7], 512
    $region25: #{tpu_custom_call.1} parent=1 // pred_fallthru
      _
    %p56 = scmp.eq.s32.totalorder 0, 0
    // Predicated region
    $region26: #{tpu_custom_call.1} parent=1 // pred_check
      %p57 = pneg %p56
    $region27: #{tpu_custom_call.1} parent=1 // pred_check_branch
      %59 = sbr.rel (%p57) target = $region29
    $region28: #{tpu_custom_call.1} parent=1 // pred_region
      %v60 = vld [vmem:[#allocation3] sm:$0xff]
      %v61 = vld [vmem:[#allocation3 + $0x8] sm:$0xff]
      %v62 = vld [vmem:[#allocation3 + $0x10] sm:$0xff]
      %v63 = vld [vmem:[#allocation3 + $0x18] sm:$0xff]
      %64 = vst [vmem:[#allocation2] sm:$0xff] %v60
      %65 = vst [vmem:[#allocation2 + $0x8] sm:$0xff] %v61
      %66 = vst [vmem:[#allocation2 + $0x10] sm:$0xff] %v62
      %67 = vst [vmem:[#allocation2 + $0x18] sm:$0xff] %v63
    $region29: #{tpu_custom_call.1} parent=1 // pred_fallthru
      _
    %v68 = vld [vmem:[#allocation6] sm:$0xff]
    %v69 = vld [vmem:[#allocation6 + $0x8] sm:$0xff]
    %v70 = vld [vmem:[#allocation6 + $0x10] sm:$0xff]
    %v71 = vld [vmem:[#allocation6 + $0x18] sm:$0xff]
    %v72 = vld [vmem:[#allocation8] sm:$0xff]
    %v73 = vld [vmem:[#allocation8 + $0x8] sm:$0xff]
    %v74 = vld [vmem:[#allocation8 + $0x10] sm:$0xff]
    %v75 = vld [vmem:[#allocation8 + $0x18] sm:$0xff]
    %v76 = vld [vmem:[#allocation2] sm:$0xff]
    %v77 = vld [vmem:[#allocation2 + $0x8] sm:$0xff]
    %v78 = vld [vmem:[#allocation2 + $0x10] sm:$0xff]
    %v79 = vld [vmem:[#allocation2 + $0x18] sm:$0xff]
    %vm80 = vcmask 261120
    %v82 = vsel %vm80, %v68, 0
    %v85 = vsel %vm80, %v69, 0
    %v88 = vsel %vm80, %v70, 0
    %v91 = vsel %vm80, %v71, 0
    %93 = vmatprep.subr.mxu0 0.0
    %94 = vmatpush1.msra.mxu0 0.0
    %95 = vmatprep.subr.mxu0 0.0
    %96 = vmatpush1.msra.mxu0 0.0
    %97 = vmatprep.subr.mxu0 0.0
    %98 = vmatpush1.msra.mxu0 0.0
    %99 = vmatprep.subr.mxu0 0.0
    %100 = vmatpush1.msra.mxu0 0.0
    %101 = vmatprep.subr.mxu0 0.0
    %102 = vmatpush1.msra.mxu0 0.0
    %103 = vmatprep.subr.mxu0 0.0
    %104 = vmatpush1.msra.mxu0 0.0
    %105 = vmatprep.subr.mxu0 0.0
    %106 = vmatpush1.msra.mxu0 0.0
    %107 = vmatprep.subr.mxu0 0.0
    %108 = vmatpush1.msra.mxu0 0.0
    %109 = vmatprep.subr.mxu0 0.0
    %110 = vmatpush1.msra.mxu0 0.0
    %111 = vmatprep.subr.mxu0 0.0
    %112 = vmatpush1.msra.mxu0 0.0
    %113 = vmatprep.subr.mxu0 0.0
    %114 = vmatpush1.msra.mxu0 0.0
    %115 = vmatprep.subr.mxu0 0.0
    %116 = vmatpush1.msra.mxu0 0.0
    %117 = vmatprep.subr.mxu0 0.0
    %118 = vmatpush1.msra.mxu0 %v79
    %119 = vmatprep.subr.mxu0 0.0
    %120 = vmatpush1.msra.mxu0 %v78
    %121 = vmatprep.subr.mxu0 0.0
    %122 = vmatpush1.msra.mxu0 %v77
    %123 = vmatprep.subr.mxu0 0.0
    %124 = vmatpush1.msra.mxu0 %v76
    %125 = vmatprep.subr.mxu0 0.0
    %126 = vmatpush2.msra.mxu0 0.0
    %127 = vmatprep.subr.mxu0 0.0
    %128 = vmatpush2.msra.mxu0 0.0
    %129 = vmatprep.subr.mxu0 0.0
    %130 = vmatpush2.msra.mxu0 0.0
    %131 = vmatprep.subr.mxu0 0.0
    %132 = vmatpush2.msra.mxu0 0.0
    %133 = vmatprep.subr.mxu0 0.0
    %134 = vmatpush2.msra.mxu0 0.0
    %135 = vmatprep.subr.mxu0 0.0
    %136 = vmatpush2.msra.mxu0 0.0
    %137 = vmatprep.subr.mxu0 0.0
    %138 = vmatpush2.msra.mxu0 0.0
    %139 = vmatprep.subr.mxu0 0.0
    %140 = vmatpush2.msra.mxu0 0.0
    %141 = vmatprep.subr.mxu0 0.0
    %142 = vmatpush2.msra.mxu0 0.0
    %143 = vmatprep.subr.mxu0 0.0
    %144 = vmatpush2.msra.mxu0 0.0
    %145 = vmatprep.subr.mxu0 0.0
    %146 = vmatpush2.msra.mxu0 0.0
    %147 = vmatprep.subr.mxu0 0.0
    %148 = vmatpush2.msra.mxu0 0.0
    %149 = vmatprep.subr.mxu0 0.0
    %150 = vmatpush2.msra.mxu0 0.0
    %151 = vmatprep.subr.mxu0 0.0
    %152 = vmatpush2.msra.mxu0 0.0
    %153 = vmatprep.subr.mxu0 0.0
    %154 = vmatpush2.msra.mxu0 0.0
    %155 = vmatprep.subr.mxu0 0.0
    %156 = vmatpush2.msra.mxu0 0.0
    %157 = vmatprep.mubr.f32.mxu0 0.0
    %158 = vmatmul.mubr.f32.gmra.mxu0 %v82
    %v159 = vpop.f32.mrf.mxu0
    %v160 = vadd.f32 %v72, %v159
    %v161 = vpop.f32.mrf.mxu0
    %162 = vmatprep.mubr.f32.mxu0 0.0
    %163 = vmatmul.mubr.f32.gmra.mxu0 %v85
    %v164 = vpop.f32.mrf.mxu0
    %v165 = vadd.f32 %v73, %v164
    %v166 = vpop.f32.mrf.mxu0
    %167 = vmatprep.mubr.f32.mxu0 0.0
    %168 = vmatmul.mubr.f32.gmra.mxu0 %v88
    %v169 = vpop.f32.mrf.mxu0
    %v170 = vadd.f32 %v74, %v169
    %v171 = vpop.f32.mrf.mxu0
    %172 = vmatprep.mubr.f32.mxu0 0.0
    %173 = vmatmul.mubr.f32.gmra.mxu0 %v91
    %v174 = vpop.f32.mrf.mxu0
    %v175 = vadd.f32 %v75, %v174
    %v176 = vpop.f32.mrf.mxu0
    %177 = vdwg.mxu0
    %v178 = vtanh.pop %v160
    %v179 = vtanh.pop %v165
    %v180 = vtanh.pop %v170
    %v181 = vtanh.pop %v175
    %182 = vst [vmem:[#allocation9] sm:$0xff] %v178
    %183 = vst [vmem:[#allocation9 + $0x8] sm:$0xff] %v179
    %184 = vst [vmem:[#allocation9 + $0x10] sm:$0xff] %v180
    %185 = vst [vmem:[#allocation9 + $0x18] sm:$0xff] %v181
    %186 = vmatprep.subr.mxu0 0.0
    %187 = vmatpush1.msra.mxu0 0.0
    %188 = vmatprep.subr.mxu0 0.0
    %189 = vmatpush1.msra.mxu0 0.0
    %190 = vmatprep.subr.mxu0 0.0
    %191 = vmatpush1.msra.mxu0 0.0
    %192 = vmatprep.subr.mxu0 0.0
    %193 = vmatpush1.msra.mxu0 0.0
    %194 = vmatprep.subr.mxu0 0.0
    %195 = vmatpush1.msra.mxu0 0.0
    %196 = vmatprep.subr.mxu0 0.0
    %197 = vmatpush1.msra.mxu0 0.0
    %198 = vmatprep.subr.mxu0 0.0
    %199 = vmatpush1.msra.mxu0 0.0
    %200 = vmatprep.subr.mxu0 0.0
    %201 = vmatpush1.msra.mxu0 0.0
    %202 = vmatprep.subr.mxu0 0.0
    %203 = vmatpush1.msra.mxu0 0.0
    %204 = vmatprep.subr.mxu0 0.0
    %205 = vmatpush1.msra.mxu0 0.0
    %206 = vmatprep.subr.mxu0 0.0
    %207 = vmatpush1.msra.mxu0 0.0
    %208 = vmatprep.subr.mxu0 0.0
    %209 = vmatpush1.msra.mxu0 0.0
    %210 = vmatprep.subr.mxu0 0.0
    %211 = vmatpush1.msra.mxu0 %v181
    %212 = vmatprep.subr.mxu0 0.0
    %213 = vmatpush1.msra.mxu0 %v180
    %214 = vmatprep.subr.mxu0 0.0
    %215 = vmatpush1.msra.mxu0 %v179
    %216 = vmatprep.subr.mxu0 0.0
    %217 = vmatpush1.msra.mxu0 %v178
    %218 = vmatprep.subr.mxu0 0.0
    %219 = vmatpush2.msra.mxu0 0.0
    %220 = vmatprep.subr.mxu0 0.0
    %221 = vmatpush2.msra.mxu0 0.0
    %222 = vmatprep.subr.mxu0 0.0
    %223 = vmatpush2.msra.mxu0 0.0
    %224 = vmatprep.subr.mxu0 0.0
    %225 = vmatpush2.msra.mxu0 0.0
    %226 = vmatprep.subr.mxu0 0.0
    %227 = vmatpush2.msra.mxu0 0.0
    %228 = vmatprep.subr.mxu0 0.0
    %229 = vmatpush2.msra.mxu0 0.0
    %230 = vmatprep.subr.mxu0 0.0
    %231 = vmatpush2.msra.mxu0 0.0
    %232 = vmatprep.subr.mxu0 0.0
    %233 = vmatpush2.msra.mxu0 0.0
    %234 = vmatprep.subr.mxu0 0.0
    %235 = vmatpush2.msra.mxu0 0.0
    %236 = vmatprep.subr.mxu0 0.0
    %237 = vmatpush2.msra.mxu0 0.0
    %238 = vmatprep.subr.mxu0 0.0
    %239 = vmatpush2.msra.mxu0 0.0
    %240 = vmatprep.subr.mxu0 0.0
    %241 = vmatpush2.msra.mxu0 0.0
    %242 = vmatprep.subr.mxu0 0.0
    %243 = vmatpush2.msra.mxu0 0.0
    %244 = vmatprep.subr.mxu0 0.0
    %245 = vmatpush2.msra.mxu0 0.0
    %246 = vmatprep.subr.mxu0 0.0
    %247 = vmatpush2.msra.mxu0 0.0
    %248 = vmatprep.subr.mxu0 0.0
    %249 = vmatpush2.msra.mxu0 0.0
    %250 = vmatprep.mubr.f32.mxu0 0.0
    %251 = vmatmul.mubr.f32.gmra.mxu0 %v82
    %v252 = vpop.f32.mrf.mxu0
    %v253 = vadd.f32 %v72, %v252
    %v254 = vpop.f32.mrf.mxu0
    %255 = vmatprep.mubr.f32.mxu0 0.0
    %256 = vmatmul.mubr.f32.gmra.mxu0 %v85
    %v257 = vpop.f32.mrf.mxu0
    %v258 = vadd.f32 %v73, %v257
    %v259 = vpop.f32.mrf.mxu0
    %260 = vmatprep.mubr.f32.mxu0 0.0
    %261 = vmatmul.mubr.f32.gmra.mxu0 %v88
    %v262 = vpop.f32.mrf.mxu0
    %v263 = vadd.f32 %v74, %v262
    %v264 = vpop.f32.mrf.mxu0
    %265 = vmatprep.mubr.f32.mxu0 0.0
    %266 = vmatmul.mubr.f32.gmra.mxu0 %v91
    %v267 = vpop.f32.mrf.mxu0
    %v268 = vadd.f32 %v75, %v267
    %v269 = vpop.f32.mrf.mxu0
    %270 = vdwg.mxu0
    %v271 = vtanh.pop %v253
    %v272 = vtanh.pop %v258
    %v273 = vtanh.pop %v263
    %v274 = vtanh.pop %v268
    %s275 = scalar_lea.vmem [#allocation9], 32
    %276 = vst [vmem:[%s275] sm:$0xff] %v271
    %277 = vst [vmem:[%s275 + $0x8] sm:$0xff] %v272
    %278 = vst [vmem:[%s275 + $0x10] sm:$0xff] %v273
    %279 = vst [vmem:[%s275 + $0x18] sm:$0xff] %v274
    %280 = vmatprep.subr.mxu0 0.0
    %281 = vmatpush1.msra.mxu0 0.0
    %282 = vmatprep.subr.mxu0 0.0
    %283 = vmatpush1.msra.mxu0 0.0
    %284 = vmatprep.subr.mxu0 0.0
    %285 = vmatpush1.msra.mxu0 0.0
    %286 = vmatprep.subr.mxu0 0.0
    %287 = vmatpush1.msra.mxu0 0.0
    %288 = vmatprep.subr.mxu0 0.0
    %289 = vmatpush1.msra.mxu0 0.0
    %290 = vmatprep.subr.mxu0 0.0
    %291 = vmatpush1.msra.mxu0 0.0
    %292 = vmatprep.subr.mxu0 0.0
    %293 = vmatpush1.msra.mxu0 0.0
    %294 = vmatprep.subr.mxu0 0.0
    %295 = vmatpush1.msra.mxu0 0.0
    %296 = vmatprep.subr.mxu0 0.0
    %297 = vmatpush1.msra.mxu0 0.0
    %298 = vmatprep.subr.mxu0 0.0
    %299 = vmatpush1.msra.mxu0 0.0
    %300 = vmatprep.subr.mxu0 0.0
    %301 = vmatpush1.msra.mxu0 0.0
    %302 = vmatprep.subr.mxu0 0.0
    %303 = vmatpush1.msra.mxu0 0.0
    %304 = vmatprep.subr.mxu0 0.0
    %305 = vmatpush1.msra.mxu0 %v274
    %306 = vmatprep.subr.mxu0 0.0
    %307 = vmatpush1.msra.mxu0 %v273
    %308 = vmatprep.subr.mxu0 0.0
    %309 = vmatpush1.msra.mxu0 %v272
    %310 = vmatprep.subr.mxu0 0.0
    %311 = vmatpush1.msra.mxu0 %v271
    %312 = vmatprep.subr.mxu0 0.0
    %313 = vmatpush2.msra.mxu0 0.0
    %314 = vmatprep.subr.mxu0 0.0
    %315 = vmatpush2.msra.mxu0 0.0
    %316 = vmatprep.subr.mxu0 0.0
    %317 = vmatpush2.msra.mxu0 0.0
    %318 = vmatprep.subr.mxu0 0.0
    %319 = vmatpush2.msra.mxu0 0.0
    %320 = vmatprep.subr.mxu0 0.0
    %321 = vmatpush2.msra.mxu0 0.0
    %322 = vmatprep.subr.mxu0 0.0
    %323 = vmatpush2.msra.mxu0 0.0
    %324 = vmatprep.subr.mxu0 0.0
    %325 = vmatpush2.msra.mxu0 0.0
    %326 = vmatprep.subr.mxu0 0.0
    %327 = vmatpush2.msra.mxu0 0.0
    %328 = vmatprep.subr.mxu0 0.0
    %329 = vmatpush2.msra.mxu0 0.0
    %330 = vmatprep.subr.mxu0 0.0
    %331 = vmatpush2.msra.mxu0 0.0
    %332 = vmatprep.subr.mxu0 0.0
    %333 = vmatpush2.msra.mxu0 0.0
    %334 = vmatprep.subr.mxu0 0.0
    %335 = vmatpush2.msra.mxu0 0.0
    %336 = vmatprep.subr.mxu0 0.0
    %337 = vmatpush2.msra.mxu0 0.0
    %338 = vmatprep.subr.mxu0 0.0
    %339 = vmatpush2.msra.mxu0 0.0
    %340 = vmatprep.subr.mxu0 0.0
    %341 = vmatpush2.msra.mxu0 0.0
    %342 = vmatprep.subr.mxu0 0.0
    %343 = vmatpush2.msra.mxu0 0.0
    %344 = vmatprep.mubr.f32.mxu0 0.0
    %345 = vmatmul.mubr.f32.gmra.mxu0 %v82
    %v346 = vpop.f32.mrf.mxu0
    %v347 = vadd.f32 %v72, %v346
    %v348 = vpop.f32.mrf.mxu0
    %349 = vmatprep.mubr.f32.mxu0 0.0
    %350 = vmatmul.mubr.f32.gmra.mxu0 %v85
    %v351 = vpop.f32.mrf.mxu0
    %v352 = vadd.f32 %v73, %v351
    %v353 = vpop.f32.mrf.mxu0
    %354 = vmatprep.mubr.f32.mxu0 0.0
    %355 = vmatmul.mubr.f32.gmra.mxu0 %v88
    %v356 = vpop.f32.mrf.mxu0
    %v357 = vadd.f32 %v74, %v356
    %v358 = vpop.f32.mrf.mxu0
    %359 = vmatprep.mubr.f32.mxu0 0.0
    %360 = vmatmul.mubr.f32.gmra.mxu0 %v91
    %v361 = vpop.f32.mrf.mxu0
    %v362 = vadd.f32 %v75, %v361
    %v363 = vpop.f32.mrf.mxu0
    %364 = vdwg.mxu0
    %v365 = vtanh.pop %v347
    %v366 = vtanh.pop %v352
    %v367 = vtanh.pop %v357
    %v368 = vtanh.pop %v362
    %s369 = scalar_lea.vmem [#allocation9], 64
    %370 = vst [vmem:[%s369] sm:$0xff] %v365
    %371 = vst [vmem:[%s369 + $0x8] sm:$0xff] %v366
    %372 = vst [vmem:[%s369 + $0x10] sm:$0xff] %v367
    %373 = vst [vmem:[%s369 + $0x18] sm:$0xff] %v368
    %374 = vmatprep.subr.mxu0 0.0
    %375 = vmatpush1.msra.mxu0 0.0
    %376 = vmatprep.subr.mxu0 0.0
    %377 = vmatpush1.msra.mxu0 0.0
    %378 = vmatprep.subr.mxu0 0.0
    %379 = vmatpush1.msra.mxu0 0.0
    %380 = vmatprep.subr.mxu0 0.0
    %381 = vmatpush1.msra.mxu0 0.0
    %382 = vmatprep.subr.mxu0 0.0
    %383 = vmatpush1.msra.mxu0 0.0
    %384 = vmatprep.subr.mxu0 0.0
    %385 = vmatpush1.msra.mxu0 0.0
    %386 = vmatprep.subr.mxu0 0.0
    %387 = vmatpush1.msra.mxu0 0.0
    %388 = vmatprep.subr.mxu0 0.0
    %389 = vmatpush1.msra.mxu0 0.0
    %390 = vmatprep.subr.mxu0 0.0
    %391 = vmatpush1.msra.mxu0 0.0
    %392 = vmatprep.subr.mxu0 0.0
    %393 = vmatpush1.msra.mxu0 0.0
    %394 = vmatprep.subr.mxu0 0.0
    %395 = vmatpush1.msra.mxu0 0.0
    %396 = vmatprep.subr.mxu0 0.0
    %397 = vmatpush1.msra.mxu0 0.0
    %398 = vmatprep.subr.mxu0 0.0
    %399 = vmatpush1.msra.mxu0 %v368
    %400 = vmatprep.subr.mxu0 0.0
    %401 = vmatpush1.msra.mxu0 %v367
    %402 = vmatprep.subr.mxu0 0.0
    %403 = vmatpush1.msra.mxu0 %v366
    %404 = vmatprep.subr.mxu0 0.0
    %405 = vmatpush1.msra.mxu0 %v365
    %406 = vmatprep.subr.mxu0 0.0
    %407 = vmatpush2.msra.mxu0 0.0
    %408 = vmatprep.subr.mxu0 0.0
    %409 = vmatpush2.msra.mxu0 0.0
    %410 = vmatprep.subr.mxu0 0.0
    %411 = vmatpush2.msra.mxu0 0.0
    %412 = vmatprep.subr.mxu0 0.0
    %413 = vmatpush2.msra.mxu0 0.0
    %414 = vmatprep.subr.mxu0 0.0
    %415 = vmatpush2.msra.mxu0 0.0
    %416 = vmatprep.subr.mxu0 0.0
    %417 = vmatpush2.msra.mxu0 0.0
    %418 = vmatprep.subr.mxu0 0.0
    %419 = vmatpush2.msra.mxu0 0.0
    %420 = vmatprep.subr.mxu0 0.0
    %421 = vmatpush2.msra.mxu0 0.0
    %422 = vmatprep.subr.mxu0 0.0
    %423 = vmatpush2.msra.mxu0 0.0
    %424 = vmatprep.subr.mxu0 0.0
    %425 = vmatpush2.msra.mxu0 0.0
    %426 = vmatprep.subr.mxu0 0.0
    %427 = vmatpush2.msra.mxu0 0.0
    %428 = vmatprep.subr.mxu0 0.0
    %429 = vmatpush2.msra.mxu0 0.0
    %430 = vmatprep.subr.mxu0 0.0
    %431 = vmatpush2.msra.mxu0 0.0
    %432 = vmatprep.subr.mxu0 0.0
    %433 = vmatpush2.msra.mxu0 0.0
    %434 = vmatprep.subr.mxu0 0.0
    %435 = vmatpush2.msra.mxu0 0.0
    %436 = vmatprep.subr.mxu0 0.0
    %437 = vmatpush2.msra.mxu0 0.0
    %438 = vmatprep.mubr.f32.mxu0 0.0
    %439 = vmatmul.mubr.f32.gmra.mxu0 %v82
    %v440 = vpop.f32.mrf.mxu0
    %v441 = vadd.f32 %v72, %v440
    %v442 = vpop.f32.mrf.mxu0
    %443 = vmatprep.mubr.f32.mxu0 0.0
    %444 = vmatmul.mubr.f32.gmra.mxu0 %v85
    %v445 = vpop.f32.mrf.mxu0
    %v446 = vadd.f32 %v73, %v445
    %v447 = vpop.f32.mrf.mxu0
    %448 = vmatprep.mubr.f32.mxu0 0.0
    %449 = vmatmul.mubr.f32.gmra.mxu0 %v88
    %v450 = vpop.f32.mrf.mxu0
    %v451 = vadd.f32 %v74, %v450
    %v452 = vpop.f32.mrf.mxu0
    %453 = vmatprep.mubr.f32.mxu0 0.0
    %454 = vmatmul.mubr.f32.gmra.mxu0 %v91
    %v455 = vpop.f32.mrf.mxu0
    %v456 = vadd.f32 %v75, %v455
    %v457 = vpop.f32.mrf.mxu0
    %458 = vdwg.mxu0
    %v459 = vtanh.pop %v441
    %v460 = vtanh.pop %v446
    %v461 = vtanh.pop %v451
    %v462 = vtanh.pop %v456
    %s463 = scalar_lea.vmem [#allocation9], 96
    %464 = vst [vmem:[%s463] sm:$0xff] %v459
    %465 = vst [vmem:[%s463 + $0x8] sm:$0xff] %v460
    %466 = vst [vmem:[%s463 + $0x10] sm:$0xff] %v461
    %467 = vst [vmem:[%s463 + $0x18] sm:$0xff] %v462
    %468 = vst [vmem:[#allocation2] sm:$0xff] %v459
    %469 = vst [vmem:[#allocation2 + $0x8] sm:$0xff] %v460
    %470 = vst [vmem:[#allocation2 + $0x10] sm:$0xff] %v461
    %471 = vst [vmem:[#allocation2 + $0x18] sm:$0xff] %v462
    // Predicated region
    $region30: #{tpu_custom_call.1} parent=1 // pred_check
      _
    $region31: #{tpu_custom_call.1} parent=1 // pred_check_branch
      %473 = sbr.rel (0) target = $region33
    $region32: #{tpu_custom_call.1} parent=1 // pred_region
      %s475 = ssub.s32 2048, 2048
      %476 = vsyncadd [#allocation5], %s475
      %s477 = sshll.u32 [#allocation9], 4
      %s478 = int_to_ptr.vmem [resolvable:$true] %s477
      %483 = dma.vmem_to_hbm [thread:$0]  %s478, 2048, %s3, [#allocation5], 128, 128, 8
    $region33: #{tpu_custom_call.1} parent=1 // pred_fallthru
      _
    // Predicated region
    $region34: #{tpu_custom_call.1} parent=1 // pred_check
      _
    $region35: #{tpu_custom_call.1} parent=1 // pred_check_branch
      %485 = sbr.rel (0) target = $region37
    $region36: #{tpu_custom_call.1} parent=1 // pred_region
      %486 = dma.done [#allocation5], 2048
    $region37: #{tpu_custom_call.1} parent=1 // pred_fallthru
      _
    %487 = vsyncpa [#allocation4], 1
    %488 = vsyncpa [#allocation7], 1
    %489 = vsyncpa [#allocation5], 1

</llo_original>
